<compile_context>
chip_gen: v7x
topology: tpu7x:2x2x1
jax: 0.10.0
libtpu: 0.0.40
codegen_flags: <defaults>
</compile_context>

<pallas_src>
import functools

import jax
import jax.numpy as jnp
from jax.experimental import pallas as pl
from jax.experimental.pallas import tpu as pltpu


def _depth_loss_kernel(disp_ref, gt_ref, num_ref, den_ref, *, depth_min, depth_max):
    j = pl.program_id(1)  # pixel-tile (reduction) axis — last grid axis

    @pl.when(j == 0)
    def _():
        num_ref[...] = jnp.zeros_like(num_ref)
        den_ref[...] = jnp.zeros_like(den_ref)

    disp = disp_ref[...].astype(jnp.float32)   # (G, T)
    gt = gt_ref[...].astype(jnp.float32)       # (G, T)

    # disp -> uniform depth
    min_disp = 1.0 / depth_max
    max_disp = 1.0 / depth_min
    scaled_disp = min_disp + (max_disp - min_disp) * disp
    # Exact divide keeps bit-accuracy with the reference.
    # (pl.reciprocal(scaled_disp, approx=True) would move this to the EUP on
    #  v7x at ~1e-3 relative error.)
    depth_est = 1.0 / scaled_disp

    # Thresholds are hardcoded to (0.1, 10.0) to match the PyTorch forward.
    mask = jnp.logical_and(gt > 0.1, gt < 10.0)
    abs_err = jnp.where(mask, jnp.abs(depth_est - gt), 0.0)

    num_ref[...] += jnp.sum(abs_err, axis=1, keepdims=True)                  # (G, 1)
    den_ref[...] += jnp.sum(mask.astype(jnp.float32), axis=1, keepdims=True)  # (G, 1)


def _round_up(x, m):
    return ((x + m - 1) // m) * m


def depth_loss(disp_est, depth_gt, rgb=None, *, depth_min=0.1, depth_max=10.0):
    """Pallas implementation of DepthLoss.forward (rgb is unused in forward)."""
    del rgb  # unused by the PyTorch forward
    B, C, H, W = disp_est.shape
    assert depth_gt.shape == disp_est.shape

    N = B * C
    HW = H * W
    itemsize = jnp.dtype(disp_est.dtype).itemsize

    # --- choose block sizes (G images x T pixels per grid step) -------------
    # Keep one input block <= ~2 MiB so 2 inputs x 2 pipeline buffers <= 8 MiB
    # (well under the 16 MiB v5e default scoped-VMEM budget).
    max_block_elems = (2 * 1024 * 1024) // itemsize
    hw_pad = _round_up(HW, 1024)  # lane-dense: multiple of 8 sublanes x 128 lanes

    if 8 * hw_pad <= max_block_elems:
        # Whole image(s) per step; batch several images to amortize per-step cost.
        T = hw_pad
        g_cap = (max_block_elems // hw_pad) // 8 * 8
        G = min(max(_round_up(N, 8), 8), max(g_cap, 8))
    else:
        # Large images: tile the pixel axis, one group of 8 images at a time.
        G = 8
        T = max(1024, (max_block_elems // 8) // 1024 * 1024)
        hw_pad = _round_up(HW, T)

    n_pad = _round_up(max(N, G), G)

    # --- lane-dense, self-masking padding ------------------------------------
    disp_flat = disp_est.reshape(N, HW)
    gt_flat = depth_gt.reshape(N, HW)
    if (n_pad != N) or (hw_pad != HW):
        disp_flat = jnp.pad(disp_flat, ((0, n_pad - N), (0, hw_pad - HW)))
        gt_flat = jnp.pad(gt_flat, ((0, n_pad - N), (0, hw_pad - HW)))

    kernel = functools.partial(
        _depth_loss_kernel, depth_min=float(depth_min), depth_max=float(depth_max)
    )

    grid = (n_pad // G, hw_pad // T)
    bytes_accessed = 2 * n_pad * hw_pad * itemsize + 2 * n_pad * 4

    num, den = pl.pallas_call(
        kernel,
        out_shape=(
            jax.ShapeDtypeStruct((n_pad, 1), jnp.float32),
            jax.ShapeDtypeStruct((n_pad, 1), jnp.float32),
        ),
        grid_spec=pltpu.PrefetchScalarGridSpec(
            num_scalar_prefetch=0,
            grid=grid,
            in_specs=[
                pl.BlockSpec((G, T), lambda i, j: (i, j)),
                pl.BlockSpec((G, T), lambda i, j: (i, j)),
            ],
            out_specs=[
                pl.BlockSpec((G, 1), lambda i, j: (i, 0)),
                pl.BlockSpec((G, 1), lambda i, j: (i, 0)),
            ],
        ),
        compiler_params=pltpu.CompilerParams(
            dimension_semantics=("parallel", "arbitrary"),
        ),
        cost_estimate=pl.CostEstimate(
            flops=10 * n_pad * hw_pad,
            transcendentals=0,
            bytes_accessed=bytes_accessed,
        ),
    )(disp_flat, gt_flat)

    # Final per-image divide + mean over (B, C) images — negligible work.
    num = num[:N, 0]
    den = den[:N, 0]
    return jnp.mean(num / (den + 0.0001))


def _depth_loss_ref(disp_est, depth_gt, depth_min, depth_max):
    """Pure-JAX reference mirroring the PyTorch forward."""
    min_disp = 1.0 / depth_max
    max_disp = 1.0 / depth_min
    depth_est = 1.0 / (min_disp + (max_disp - min_disp) * disp_est)
    mask = jnp.logical_and(depth_gt > 0.1, depth_gt < 10.0).astype(jnp.float32)
    num = jnp.sum(jnp.abs(depth_est - depth_gt) * mask, axis=(2, 3))
    den = jnp.sum(mask, axis=(2, 3))
    return jnp.mean(num / (den + 0.0001))


if __name__ == "__main__":
    key = jax.random.PRNGKey(0)
    k1, k2, k3 = jax.random.split(key, 3)

    B, C, H, W = 2, 4, 16, 16
    depth_min, depth_max = 0.1, 10.0

    # disparity predictions in (0, 1), ground-truth depth spanning the valid range
    disp_est = jax.random.uniform(k1, (B, C, H, W), jnp.float32, 0.01, 0.99)
    depth_gt = jax.random.uniform(k2, (B, C, H, W), jnp.float32, 0.0, 12.0)
    rgb = jax.random.uniform(k3, (B, 3, H, W), jnp.float32)  # unused by forward

    loss = depth_loss(disp_est, depth_gt, rgb,
                      depth_min=depth_min, depth_max=depth_max)
    loss = jax.block_until_ready(loss)

    ref = _depth_loss_ref(disp_est, depth_gt, depth_min, depth_max)
    assert jnp.allclose(loss, ref, rtol=1e-5, atol=1e-5), (loss, ref)

    print("KERNEL_OK")
</pallas_src>

<mosaic_0001>
module attributes {stable_mosaic.version = 11 : i64} {
  func.func @_depth_loss_kernel(%arg0: i32, %arg1: i32, %arg2: memref<8x1024xf32, #tpu.memory_space<vmem>>, %arg3: memref<8x1024xf32, #tpu.memory_space<vmem>>, %arg4: memref<8x1xf32, #tpu.memory_space<vmem>>, %arg5: memref<8x1xf32, #tpu.memory_space<vmem>>) attributes {dimension_semantics = [#tpu.dimension_semantics<parallel>, #tpu.dimension_semantics<arbitrary>], iteration_bounds = array<i64: 1, 1>, scalar_prefetch = 0 : i64, scratch_operands = 0 : i64, tpu.core_type = #tpu.core_type<tc>, window_params = [{transform_indices = @transform_0, window_bounds = array<i64: 8, 1024>}, {transform_indices = @transform_1, window_bounds = array<i64: 8, 1024>}, {transform_indices = @transform_2, window_bounds = array<i64: 8, 1>}, {transform_indices = @transform_3, window_bounds = array<i64: 8, 1>}]} {
    %c0_i32 = arith.constant 0 : i32
    %0 = arith.cmpi eq, %arg1, %c0_i32 : i32
    %1 = arith.extui %0 : i1 to i32
    %c0_i32_0 = arith.constant 0 : i32
    %2 = arith.cmpi ne, %1, %c0_i32_0 : i32
    scf.if %2 {
      %cst_19 = arith.constant 0.000000e+00 : f32
      %32 = vector.broadcast %cst_19 : f32 to vector<8x1xf32>
      %c0_20 = arith.constant 0 : index
      %c0_21 = arith.constant 0 : index
      %33 = vector.load %arg4[%c0_20, %c0_21] : memref<8x1xf32, #tpu.memory_space<vmem>>, vector<8x1xf32>
      tpu.vector_store %arg4[%c0_20, %c0_21], %32 {strides = array<i32>} : memref<8x1xf32, #tpu.memory_space<vmem>>, vector<8x1xf32>,
      %cst_22 = arith.constant 0.000000e+00 : f32
      %34 = vector.broadcast %cst_22 : f32 to vector<8x1xf32>
      %c0_23 = arith.constant 0 : index
      %c0_24 = arith.constant 0 : index
      %35 = vector.load %arg5[%c0_23, %c0_24] : memref<8x1xf32, #tpu.memory_space<vmem>>, vector<8x1xf32>
      tpu.vector_store %arg5[%c0_23, %c0_24], %34 {strides = array<i32>} : memref<8x1xf32, #tpu.memory_space<vmem>>, vector<8x1xf32>,
    } else {
    }
    %c0 = arith.constant 0 : index
    %c0_1 = arith.constant 0 : index
    %3 = vector.load %arg2[%c0, %c0_1] : memref<8x1024xf32, #tpu.memory_space<vmem>>, vector<8x1024xf32>
    %c0_2 = arith.constant 0 : index
    %c0_3 = arith.constant 0 : index
    %4 = vector.load %arg3[%c0_2, %c0_3] : memref<8x1024xf32, #tpu.memory_space<vmem>>, vector<8x1024xf32>
    %cst = arith.constant 9.89999961 : f32
    %5 = vector.broadcast %cst : f32 to vector<8x1024xf32>
    %6 = arith.mulf %5, %3 : vector<8x1024xf32>
    %cst_4 = arith.constant 1.000000e-01 : f32
    %7 = vector.broadcast %cst_4 : f32 to vector<8x1024xf32>
    %8 = arith.addf %7, %6 : vector<8x1024xf32>
    %cst_5 = arith.constant 1.000000e+00 : f32
    %9 = vector.broadcast %cst_5 : f32 to vector<8x1024xf32>
    %10 = arith.divf %9, %8 : vector<8x1024xf32>
    %cst_6 = arith.constant 1.000000e-01 : f32
    %11 = vector.broadcast %cst_6 : f32 to vector<8x1024xf32>
    %12 = arith.cmpf ogt, %4, %11 : vector<8x1024xf32>
    %cst_7 = arith.constant 1.000000e+01 : f32
    %13 = vector.broadcast %cst_7 : f32 to vector<8x1024xf32>
    %14 = arith.cmpf olt, %4, %13 : vector<8x1024xf32>
    %15 = arith.andi %12, %14 : vector<8x1024xi1>
    %16 = arith.subf %10, %4 : vector<8x1024xf32>
    %17 = math.absf %16 : vector<8x1024xf32>
    %cst_8 = arith.constant 0.000000e+00 : f32
    %18 = vector.broadcast %cst_8 : f32 to vector<8x1024xf32>
    %19 = arith.select %15, %17, %18 : vector<8x1024xi1>, vector<8x1024xf32>
    %c0_9 = arith.constant 0 : index
    %c0_10 = arith.constant 0 : index
    %20 = vector.load %arg4[%c0_9, %c0_10] : memref<8x1xf32, #tpu.memory_space<vmem>>, vector<8x1xf32>
    %cst_11 = arith.constant dense<0.000000e+00> : vector<8xf32>
    %21 = vector.multi_reduction <add>, %19, %cst_11 [1] : vector<8x1024xf32> to vector<8xf32>
    %22 = vector.shape_cast %21 : vector<8xf32> to vector<8x1xf32>
    %23 = arith.addf %20, %22 : vector<8x1xf32>
    %c0_12 = arith.constant 0 : index
    %c0_13 = arith.constant 0 : index
    %24 = vector.load %arg4[%c0_12, %c0_13] : memref<8x1xf32, #tpu.memory_space<vmem>>, vector<8x1xf32>
    tpu.vector_store %arg4[%c0_12, %c0_13], %23 {strides = array<i32>} : memref<8x1xf32, #tpu.memory_space<vmem>>, vector<8x1xf32>,
    %c0_14 = arith.constant 0 : index
    %c0_15 = arith.constant 0 : index
    %25 = vector.load %arg5[%c0_14, %c0_15] : memref<8x1xf32, #tpu.memory_space<vmem>>, vector<8x1xf32>
    %26 = arith.extui %15 : vector<8x1024xi1> to vector<8x1024xi32>
    %27 = arith.sitofp %26 : vector<8x1024xi32> to vector<8x1024xf32>
    %cst_16 = arith.constant dense<0.000000e+00> : vector<8xf32>
    %28 = vector.multi_reduction <add>, %27, %cst_16 [1] : vector<8x1024xf32> to vector<8xf32>
    %29 = vector.shape_cast %28 : vector<8xf32> to vector<8x1xf32>
    %30 = arith.addf %25, %29 : vector<8x1xf32>
    %c0_17 = arith.constant 0 : index
    %c0_18 = arith.constant 0 : index
    %31 = vector.load %arg5[%c0_17, %c0_18] : memref<8x1xf32, #tpu.memory_space<vmem>>, vector<8x1xf32>
    tpu.vector_store %arg5[%c0_17, %c0_18], %30 {strides = array<i32>} : memref<8x1xf32, #tpu.memory_space<vmem>>, vector<8x1xf32>,
    return
  }
  func.func @transform_0(%arg0: i32, %arg1: i32) -> (i32, i32) {
    %c0_i32 = arith.constant 0 : i32
    return %arg0, %arg1 : i32, i32
  }
  func.func @transform_1(%arg0: i32, %arg1: i32) -> (i32, i32) {
    %c0_i32 = arith.constant 0 : i32
    return %arg0, %arg1 : i32, i32
  }
  func.func @transform_2(%arg0: i32, %arg1: i32) -> (i32, i32) {
    %c0_i32 = arith.constant 0 : i32
    %c0_i32_0 = arith.constant 0 : i32
    return %arg0, %c0_i32 : i32, i32
  }
  func.func @transform_3(%arg0: i32, %arg1: i32) -> (i32, i32) {
    %c0_i32 = arith.constant 0 : i32
    %c0_i32_0 = arith.constant 0 : i32
    return %arg0, %c0_i32 : i32, i32
  }
}

</mosaic_0001>

<llo_original>
// kernel: tpu_custom_call.1
$region0: #{tpu_custom_call.1}
  #allocation0 [shape = 'u32[]', space=smem, size = 0x4, offset = 0x4, fixed_abs, tag = 'smem constant byte address 0x4 - core index']
  #allocation1 [shape = 'u32[144,128]{1,0:T(1,128)}', space=vmem, size = 0x12000, scoped, tag = 'internal scratch']
  %s0 = inlined_call_operand.hbm [shape: f32[8,1024], index: 0, kind: input, shape index: {}]
  %s1 = inlined_call_operand.hbm [shape: f32[8,1024], index: 1, kind: input, shape index: {}]
  %s2 = inlined_call_operand.vmem [shape: f32[8,1], index: 2, kind: output, shape index: {0}]
  %s3 = inlined_call_operand.vmem [shape: f32[8,1], index: 3, kind: output, shape index: {1}]
  %4 = xla_tuple %s2, %s3
  %s5 = sld [smem:[#allocation0]]
  $region38: #{tpu_custom_call.1} parent=0
    _
  %s7 = ssub.s32 1, %s5
  %s8 = scalar_select 0, %s7, %s5
  $region1: #{tpu_custom_call.1} parent=0
    #allocation2 [shape = 'u8[32768]{0}', space=vmem, size = 0x8000, scoped, tag = 'input window, operand 0, single buffered']
    #allocation3 [shape = 's32[1]{0}', space=sflag, size = 0x4, scoped, tag = 'scoped memory for tpu_custom_call.1']
    #allocation4 [shape = 'u8[32768]{0}', space=vmem, size = 0x8000, scoped, tag = 'input window, operand 1, single buffered']
    #allocation5 [shape = 's32[1]{0}', space=sflag, size = 0x4, scoped, tag = 'scoped memory for tpu_custom_call.1']
    %9 = vsyncpa [#allocation3], 0
    %10 = vsyncpa [#allocation5], 0
    // Predicated region
    $region2: #{tpu_custom_call.1} parent=1 // pred_check
      _
    $region3: #{tpu_custom_call.1} parent=1 // pred_check_branch
      %12 = sbr.rel (0) target = $region5
    $region4: #{tpu_custom_call.1} parent=1 // pred_region
      %s14 = ssub.s32 1024, 1024
      %15 = vsyncadd [#allocation3], %s14
      %s17 = sshll.u32 [#allocation2], 4
      %s18 = int_to_ptr.vmem [resolvable:$true] %s17
      %20 = dma.hbm_to_vmem [thread:$0]  %s0, 1024, %s18, [#allocation3]
    $region5: #{tpu_custom_call.1} parent=1 // pred_fallthru
      _
    // Predicated region
    $region6: #{tpu_custom_call.1} parent=1 // pred_check
      _
    $region7: #{tpu_custom_call.1} parent=1 // pred_check_branch
      %22 = sbr.rel (0) target = $region9
    $region8: #{tpu_custom_call.1} parent=1 // pred_region
      %s24 = ssub.s32 1024, 1024
      %25 = vsyncadd [#allocation5], %s24
      %s27 = sshll.u32 [#allocation4], 4
      %s28 = int_to_ptr.vmem [resolvable:$true] %s27
      %30 = dma.hbm_to_vmem [thread:$0]  %s1, 1024, %s28, [#allocation5]
    $region9: #{tpu_custom_call.1} parent=1 // pred_fallthru
      _
    // Predicated region
    $region10: #{tpu_custom_call.1} parent=1 // pred_check
      _
    $region11: #{tpu_custom_call.1} parent=1 // pred_check_branch
      %32 = sbr.rel (0) target = $region13
    $region12: #{tpu_custom_call.1} parent=1 // pred_region
      %33 = dma.done [#allocation3], 1024
    $region13: #{tpu_custom_call.1} parent=1 // pred_fallthru
      _
    // Predicated region
    $region14: #{tpu_custom_call.1} parent=1 // pred_check
      _
    $region15: #{tpu_custom_call.1} parent=1 // pred_check_branch
      %35 = sbr.rel (0) target = $region17
    $region16: #{tpu_custom_call.1} parent=1 // pred_region
      %36 = dma.done [#allocation5], 1024
    $region17: #{tpu_custom_call.1} parent=1 // pred_fallthru
      _
    %p37 = scmp.eq.s32.totalorder 0, 0
    // Predicated region
    $region18: #{tpu_custom_call.1} parent=1 // pred_check
      %p38 = pneg %p37
    $region19: #{tpu_custom_call.1} parent=1 // pred_check_branch
      %40 = sbr.rel (%p38) target = $region21
    $region20: #{tpu_custom_call.1} parent=1 // pred_region
      %vm41 = vcmask 7168
      %42 = vst.msk [vmem:[%s2] sm:$0xff] %vm41, 0.0
      %43 = vst.msk [vmem:[%s3] sm:$0xff] %vm41, 0.0
    $region21: #{tpu_custom_call.1} parent=1 // pred_fallthru
      _
    %v44 = vld [vmem:[#allocation2] sm:$0xff]
    %v45 = vld [vmem:[#allocation2 + $0x8] sm:$0xff]
    %v46 = vld [vmem:[#allocation2 + $0x10] sm:$0xff]
    %v47 = vld [vmem:[#allocation2 + $0x18] sm:$0xff]
    %v48 = vld [vmem:[#allocation2 + $0x20] sm:$0xff]
    %v49 = vld [vmem:[#allocation2 + $0x28] sm:$0xff]
    %v50 = vld [vmem:[#allocation2 + $0x30] sm:$0xff]
    %v51 = vld [vmem:[#allocation2 + $0x38] sm:$0xff]
    %v52 = vld [vmem:[#allocation4] sm:$0xff]
    %v53 = vld [vmem:[#allocation4 + $0x8] sm:$0xff]
    %v54 = vld [vmem:[#allocation4 + $0x10] sm:$0xff]
    %v55 = vld [vmem:[#allocation4 + $0x18] sm:$0xff]
    %v56 = vld [vmem:[#allocation4 + $0x20] sm:$0xff]
    %v57 = vld [vmem:[#allocation4 + $0x28] sm:$0xff]
    %v58 = vld [vmem:[#allocation4 + $0x30] sm:$0xff]
    %v59 = vld [vmem:[#allocation4 + $0x38] sm:$0xff]
    %v60 = vmul.f32 %v44, 9.9
    %v61 = vmul.f32 %v45, 9.9
    %v62 = vmul.f32 %v46, 9.9
    %v63 = vmul.f32 %v47, 9.9
    %v64 = vmul.f32 %v48, 9.9
    %v65 = vmul.f32 %v49, 9.9
    %v66 = vmul.f32 %v50, 9.9
    %v67 = vmul.f32 %v51, 9.9
    %v68 = vadd.f32 %v60, 0.1
    %v69 = vadd.f32 %v61, 0.1
    %v70 = vadd.f32 %v62, 0.1
    %v71 = vadd.f32 %v63, 0.1
    %v72 = vadd.f32 %v64, 0.1
    %v73 = vadd.f32 %v65, 0.1
    %v74 = vadd.f32 %v66, 0.1
    %v75 = vadd.f32 %v67, 0.1
    %v76 = vrcp.pop %v68
    %v77 = vmul.f32 1.0, %v76
    %v78 = vrcp.pop %v69
    %v79 = vmul.f32 1.0, %v78
    %v80 = vrcp.pop %v70
    %v81 = vmul.f32 1.0, %v80
    %v82 = vrcp.pop %v71
    %v83 = vmul.f32 1.0, %v82
    %v84 = vrcp.pop %v72
    %v85 = vmul.f32 1.0, %v84
    %v86 = vrcp.pop %v73
    %v87 = vmul.f32 1.0, %v86
    %v88 = vrcp.pop %v74
    %v89 = vmul.f32 1.0, %v88
    %v90 = vrcp.pop %v75
    %v91 = vmul.f32 1.0, %v90
    %vm92 = vcmp.gt.f32.partialorder %v52, 0.1
    %vm93 = vcmp.gt.f32.partialorder %v53, 0.1
    %vm94 = vcmp.gt.f32.partialorder %v54, 0.1
    %vm95 = vcmp.gt.f32.partialorder %v55, 0.1
    %vm96 = vcmp.gt.f32.partialorder %v56, 0.1
    %vm97 = vcmp.gt.f32.partialorder %v57, 0.1
    %vm98 = vcmp.gt.f32.partialorder %v58, 0.1
    %vm99 = vcmp.gt.f32.partialorder %v59, 0.1
    %vm100 = vcmp.lt.f32.partialorder %v52, 10.0
    %vm101 = vcmp.lt.f32.partialorder %v53, 10.0
    %vm102 = vcmp.lt.f32.partialorder %v54, 10.0
    %vm103 = vcmp.lt.f32.partialorder %v55, 10.0
    %vm104 = vcmp.lt.f32.partialorder %v56, 10.0
    %vm105 = vcmp.lt.f32.partialorder %v57, 10.0
    %vm106 = vcmp.lt.f32.partialorder %v58, 10.0
    %vm107 = vcmp.lt.f32.partialorder %v59, 10.0
    %vm108 = vmand %vm92, %vm100
    %vm109 = vmand %vm93, %vm101
    %vm110 = vmand %vm94, %vm102
    %vm111 = vmand %vm95, %vm103
    %vm112 = vmand %vm96, %vm104
    %vm113 = vmand %vm97, %vm105
    %vm114 = vmand %vm98, %vm106
    %vm115 = vmand %vm99, %vm107
    %v116 = vsub.f32 %v77, %v52
    %v117 = vsub.f32 %v79, %v53
    %v118 = vsub.f32 %v81, %v54
    %v119 = vsub.f32 %v83, %v55
    %v120 = vsub.f32 %v85, %v56
    %v121 = vsub.f32 %v87, %v57
    %v122 = vsub.f32 %v89, %v58
    %v123 = vsub.f32 %v91, %v59
    %v124 = vand.u32 2147483647, %v116
    %v125 = vand.u32 2147483647, %v117
    %v126 = vand.u32 2147483647, %v118
    %v127 = vand.u32 2147483647, %v119
    %v128 = vand.u32 2147483647, %v120
    %v129 = vand.u32 2147483647, %v121
    %v130 = vand.u32 2147483647, %v122
    %v131 = vand.u32 2147483647, %v123
    %v132 = vsel %vm108, %v124, 0.0
    %v133 = vsel %vm109, %v125, 0.0
    %v134 = vsel %vm110, %v126, 0.0
    %v135 = vsel %vm111, %v127, 0.0
    %v136 = vsel %vm112, %v128, 0.0
    %v137 = vsel %vm113, %v129, 0.0
    %v138 = vsel %vm114, %v130, 0.0
    %v139 = vsel %vm115, %v131, 0.0
    %v140 = vld [vmem:[%s2] sm:$0xff]
    %v141 = vadd.f32 %v132, %v133
    %v142 = vadd.f32 %v141, %v134
    %v143 = vadd.f32 %v142, %v135
    %v144 = vadd.f32 %v143, %v136
    %v145 = vadd.f32 %v144, %v137
    %v146 = vadd.f32 %v145, %v138
    %v147 = vadd.f32 %v146, %v139
    %148 = vadd.xlane.f32.xlu0 %v147
    %v149 = vpop.xlane.xlu0 %148
    %v150 = vadd.f32 %v140, %v149
    %vm151 = vcmask 7168
    %152 = vst.msk [vmem:[%s2] sm:$0xff] %vm151, %v150
    %v153 = vld [vmem:[%s3] sm:$0xff]
    %v154 = vsel %vm108, 1, 0
    %v155 = vsel %vm109, 1, 0
    %v156 = vsel %vm110, 1, 0
    %v157 = vsel %vm111, 1, 0
    %v158 = vsel %vm112, 1, 0
    %v159 = vsel %vm113, 1, 0
    %v160 = vsel %vm114, 1, 0
    %v161 = vsel %vm115, 1, 0
    %v162 = vcvt.s32.f32 %v154
    %v163 = vcvt.s32.f32 %v155
    %v164 = vcvt.s32.f32 %v156
    %v165 = vcvt.s32.f32 %v157
    %v166 = vcvt.s32.f32 %v158
    %v167 = vcvt.s32.f32 %v159
    %v168 = vcvt.s32.f32 %v160
    %v169 = vcvt.s32.f32 %v161
    %v170 = vadd.f32 %v162, %v163
    %v171 = vadd.f32 %v170, %v164
    %v172 = vadd.f32 %v171, %v165
    %v173 = vadd.f32 %v172, %v166
    %v174 = vadd.f32 %v173, %v167
    %v175 = vadd.f32 %v174, %v168
    %v176 = vadd.f32 %v175, %v169
    %177 = vadd.xlane.f32.xlu0 %v176
    %v178 = vpop.xlane.xlu0 %177
    %v179 = vadd.f32 %v153, %v178
    %180 = vst.msk [vmem:[%s3] sm:$0xff] %vm151, %v179
    // Predicated region
    $region22: #{tpu_custom_call.1} parent=1 // pred_check
      _
    $region23: #{tpu_custom_call.1} parent=1 // pred_check_branch
      %182 = sbr.rel (0) target = $region25
    $region24: #{tpu_custom_call.1} parent=1 // pred_region
      _
    $region25: #{tpu_custom_call.1} parent=1 // pred_fallthru
      _
    // Predicated region
    $region26: #{tpu_custom_call.1} parent=1 // pred_check
      _
    $region27: #{tpu_custom_call.1} parent=1 // pred_check_branch
      %184 = sbr.rel (0) target = $region29
    $region28: #{tpu_custom_call.1} parent=1 // pred_region
      _
    $region29: #{tpu_custom_call.1} parent=1 // pred_fallthru
      _
    // Predicated region
    $region30: #{tpu_custom_call.1} parent=1 // pred_check
      _
    $region31: #{tpu_custom_call.1} parent=1 // pred_check_branch
      %186 = sbr.rel (0) target = $region33
    $region32: #{tpu_custom_call.1} parent=1 // pred_region
      _
    $region33: #{tpu_custom_call.1} parent=1 // pred_fallthru
      _
    // Predicated region
    $region34: #{tpu_custom_call.1} parent=1 // pred_check
      _
    $region35: #{tpu_custom_call.1} parent=1 // pred_check_branch
      %188 = sbr.rel (0) target = $region37
    $region36: #{tpu_custom_call.1} parent=1 // pred_region
      _
    $region37: #{tpu_custom_call.1} parent=1 // pred_fallthru
      _
    %189 = vsyncpa [#allocation3], 1
    %190 = vsyncpa [#allocation5], 1

</llo_original>
